<compile_context>
chip_gen: v7x
topology: tpu7x:2x2x1
jax: 0.10.0
libtpu: 0.0.40
codegen_flags: <defaults>
</compile_context>

<pallas_src>
import functools

import jax
import jax.numpy as jnp
from jax import lax
from jax.experimental import pallas as pl
from jax.experimental.pallas import tpu as pltpu


# ---------------------------------------------------------------------------
# Kernels
# ---------------------------------------------------------------------------

def _skew_slab_kernel(a_ref, o_ref, *, upcast):
    """Whole-slab path.  Block: (gt, kk, n, n).

    out[g, s] = a[g, s] - a[g, kk-1-s].T
    Antisymmetry: for the spatial pair (s, kk-1-s) the two outputs are exact
    negated transposes of each other, so each (n, n) slice is loaded once and
    only one subtract per pair is issued (plus one negate).
    """
    gt, kk = a_ref.shape[0], a_ref.shape[1]
    n_pairs = kk // 2
    cdt = jnp.float32 if upcast else a_ref.dtype
    odt = o_ref.dtype

    for g in range(gt):                       # static, gt <= 8
        a = a_ref.at[g]                       # (kk, n, n) view, zero-cost
        o = o_ref.at[g]

        def pair_body(p, carry):
            x = a[p].astype(cdt)              # identity spatial slice   (n, n)
            y = a[kk - 1 - p].astype(cdt)     # flipped spatial slice    (n, n)
            d = x - y.T                       # XLU transpose + VPU subtract
            o[p] = d.astype(odt)
            o[kk - 1 - p] = (-d.T).astype(odt)
            return carry

        if n_pairs > 0:
            lax.fori_loop(0, n_pairs, pair_body, 0, unroll=n_pairs <= 8)

        if kk % 2 == 1:                       # middle spatial position (odd K*K)
            m = a[n_pairs].astype(cdt)
            o[n_pairs] = (m - m.T).astype(odt)


def _skew_rows_kernel(a_rows_ref, a_cols_ref, o_ref, *, upcast):
    """Row-tiled path for large slabs.

    Blocks: a_rows (kk, tn, n)  -- identity rows tile
            a_cols (kk, n, tn)  -- transposed-coordinates (column) tile
            out    (kk, tn, n)
    out[s, r, c] = a[s, r0+r, c] - a[kk-1-s, c, r0+r]
    """
    kk = a_rows_ref.shape[0]
    cdt = jnp.float32 if upcast else a_rows_ref.dtype
    odt = o_ref.dtype

    def body(s, carry):
        x = a_rows_ref[s].astype(cdt)           # (tn, n)
        y = a_cols_ref[kk - 1 - s].astype(cdt)  # (n, tn)
        o_ref[s] = (x - y.T).astype(odt)
        return carry

    lax.fori_loop(0, kk, body, 0, unroll=kk <= 9)


# ---------------------------------------------------------------------------
# Wrapper
# ---------------------------------------------------------------------------

_BLOCK_BYTES_BUDGET = 3 << 20    # per logical block; x4 (dbl-buffered in+out) < 16 MiB
_STEP_BYTES_TARGET = 512 << 10   # amortize the ~0.35 us/step pipeline overhead
_MAX_GROUPS_PER_STEP = 8


def _upcast_for_chip(dtype) -> bool:
    """f32 upcast only for sub-32-bit dtypes on pre-v6 chips (no bf16 VPU)."""
    if jnp.dtype(dtype).itemsize >= 4:
        return False
    try:
        kind = jax.devices()[0].device_kind.lower()
    except Exception:
        return True
    return any(tag in kind for tag in ("v2", "v3", "v4", "v5"))


def _largest_divisor_at_most(x, cap):
    cap = max(1, min(int(cap), int(x)))
    while x % cap:
        cap -= 1
    return cap


@functools.partial(jax.jit, static_argnames=("groups", "impl"))
def skew(kernel, groups, impl=None):
    """Skew-symmetrize a grouped conv kernel (Skew.forward)."""
    c_out, c_in_g, kh, kw = kernel.shape
    assert c_out % groups == 0
    n = c_out // groups
    assert c_in_g == n, "Skew requires square per-group channel blocks"
    kk = kh * kw
    itemsize = jnp.dtype(kernel.dtype).itemsize
    slab_bytes = kk * n * n * itemsize
    upcast = _upcast_for_chip(kernel.dtype)

    # glue: (C_out, n, K, K) -> (groups, K*K, n, n); the per-(group, spatial)
    # n x n channel matrix lands in the (sublane, lane) dims of the block.
    # TODO(synk): for very large weights the consumer should take the
    # (groups, kk, n, n) layout directly to avoid these extra HBM passes.
    a = kernel.reshape(groups, n, n, kk).transpose(0, 3, 1, 2)

    if impl is None:
        if slab_bytes <= _BLOCK_BYTES_BUDGET:
            impl = "slab"
        elif n % 128 == 0:
            impl = "rows"
        else:
            impl = "slab"      # oversized slab, raise vmem limit below

    if impl == "slab":
        gt = min(
            groups,
            _MAX_GROUPS_PER_STEP,
            max(1, _STEP_BYTES_TARGET // max(slab_bytes, 1)),
            max(1, _BLOCK_BYTES_BUDGET // max(slab_bytes, 1)),
        )
        if groups >= 2:
            gt = min(gt, groups // 2)     # keep >= 2 parallel steps (v7x megacore)
        gt = _largest_divisor_at_most(groups, gt)

        block_bytes = gt * slab_bytes
        need = 4 * block_bytes + (2 << 20)    # double-buffered in+out + headroom
        compiler_kwargs = {}
        if need > (14 << 20):                 # beyond the safe default scoped limit
            try:
                cap = pltpu.get_tpu_info().vmem_capacity_bytes - (8 << 20)
            except Exception:
                cap = 56 << 20
            compiler_kwargs["vmem_limit_bytes"] = int(min(need, cap))

        out = pl.pallas_call(
            functools.partial(_skew_slab_kernel, upcast=upcast),
            out_shape=jax.ShapeDtypeStruct((groups, kk, n, n), kernel.dtype),
            grid=(groups // gt,),
            in_specs=[pl.BlockSpec((gt, kk, n, n), lambda i: (i, 0, 0, 0))],
            out_specs=pl.BlockSpec((gt, kk, n, n), lambda i: (i, 0, 0, 0)),
            compiler_params=pltpu.CompilerParams(
                dimension_semantics=("parallel",), **compiler_kwargs),
            cost_estimate=pl.CostEstimate(
                flops=groups * kk * n * n,
                transcendentals=0,
                bytes_accessed=2 * groups * slab_bytes),
        )(a)

    elif impl == "rows":
        assert n % 128 == 0, "row-tiled path requires n to be a multiple of 128"
        # pick the largest lane-aligned row tile dividing n under ~2 MiB/block
        tn_cap = max(128, ((2 << 20) // max(kk * n * itemsize, 1)) // 128 * 128)
        tn = 128
        t = tn_cap
        while t >= 128:
            if n % t == 0:
                tn = t
                break
            t -= 128

        out = pl.pallas_call(
            functools.partial(_skew_rows_kernel, upcast=upcast),
            out_shape=jax.ShapeDtypeStruct((groups, kk, n, n), kernel.dtype),
            grid=(groups, n // tn),
            in_specs=[
                # identity rows tile
                pl.BlockSpec((None, kk, tn, n), lambda g, i: (g, 0, i, 0)),
                # transposed-coordinates (column) tile of the SAME input
                pl.BlockSpec((None, kk, n, tn), lambda g, i: (g, 0, 0, i)),
            ],
            out_specs=pl.BlockSpec((None, kk, tn, n), lambda g, i: (g, 0, i, 0)),
            compiler_params=pltpu.CompilerParams(
                dimension_semantics=("parallel", "parallel")),
            cost_estimate=pl.CostEstimate(
                flops=groups * kk * n * n,
                transcendentals=0,
                bytes_accessed=3 * groups * slab_bytes),
        )(a, a)

    else:
        raise ValueError(f"unknown impl: {impl!r}")

    # glue back: (groups, K*K, n, n) -> (C_out, n, K, K)
    return out.transpose(0, 2, 3, 1).reshape(c_out, n, kh, kw)


# ---------------------------------------------------------------------------
# Reference + demo
# ---------------------------------------------------------------------------

def _skew_ref(w, groups):
    c_out, n, kh, kw = w.shape
    w5 = w.reshape(groups, c_out // groups, n, kh, kw)
    out = w5 - jnp.flip(jnp.swapaxes(w5, 1, 2), axis=(-2, -1))
    return out.reshape(c_out, n, kh, kw)


if __name__ == "__main__":
    key = jax.random.PRNGKey(0)
    ok = True

    # 1) small grouped kernel, odd K*K  -> slab path, grid (2,)
    groups, n, k = 2, 8, 3
    k1, k2, k3 = jax.random.split(key, 3)
    w = jax.random.normal(k1, (groups * n, n, k, k), dtype=jnp.float32)
    out = jax.block_until_ready(skew(w, groups))
    ref = _skew_ref(w, groups)
    ok &= out.shape == w.shape and out.dtype == w.dtype
    ok &= bool(jnp.allclose(out, ref, atol=1e-6, rtol=1e-6))

    # 2) even K*K, single group  -> slab path, pair-only loop
    groups2, n2, k2s = 1, 8, 2
    w2 = jax.random.normal(k2, (groups2 * n2, n2, k2s, k2s), dtype=jnp.float32)
    out2 = jax.block_until_ready(skew(w2, groups2))
    ok &= bool(jnp.allclose(out2, _skew_ref(w2, groups2), atol=1e-6, rtol=1e-6))

    # 3) lane-aligned channels, force the row-tiled dual-BlockSpec path
    groups3, n3, k3s = 1, 128, 3
    w3 = jax.random.normal(k3, (groups3 * n3, n3, k3s, k3s), dtype=jnp.float32)
    out3 = jax.block_until_ready(skew(w3, groups3, impl="rows"))
    ok &= bool(jnp.allclose(out3, _skew_ref(w3, groups3), atol=1e-6, rtol=1e-6))

    assert ok
    print("KERNEL_OK")
</pallas_src>

<mosaic_0001>
module attributes {stable_mosaic.version = 11 : i64} {
  func.func @_skew_slab_kernel(%arg0: i32, %arg1: memref<1x9x8x8xf32, #tpu.memory_space<vmem>>, %arg2: memref<1x9x8x8xf32, #tpu.memory_space<vmem>>) attributes {dimension_semantics = [#tpu.dimension_semantics<parallel>], iteration_bounds = array<i64: 2>, scalar_prefetch = 0 : i64, scratch_operands = 0 : i64, tpu.core_type = #tpu.core_type<tc>, window_params = [{transform_indices = @transform_0, window_bounds = array<i64: 1, 9, 8, 8>}, {transform_indices = @transform_1, window_bounds = array<i64: 1, 9, 8, 8>}]} {
    %c0_i32 = arith.constant 0 : i32
    %c0_i32_0 = arith.constant 0 : i32
    %c0_i32_1 = arith.constant 0 : i32
    %c0_i32_2 = arith.constant 0 : i32
    %c0_i32_3 = arith.constant 0 : i32
    %c0_i32_4 = arith.constant 0 : i32
    %0 = tpu.memref_slice %arg1[%c0_i32, %c0_i32_2, %c0_i32_3, %c0_i32_4] : memref<1x9x8x8xf32, #tpu.memory_space<vmem>> -> memref<1x9x8x8xf32, #tpu.memory_space<vmem>>
    %1 = tpu.memref_squeeze %0 : memref<1x9x8x8xf32, #tpu.memory_space<vmem>> -> memref<9x8x8xf32, #tpu.memory_space<vmem>>
    %2 = arith.index_cast %c0_i32_1 : i32 to index
    %c0 = arith.constant 0 : index
    %c0_5 = arith.constant 0 : index
    %3 = vector.load %1[%2, %c0, %c0_5] : memref<9x8x8xf32, #tpu.memory_space<vmem>>, vector<1x8x8xf32>
    %4 = vector.shape_cast %3 : vector<1x8x8xf32> to vector<8x8xf32>
    %c8_i32 = arith.constant 8 : i32
    %5 = arith.subi %c8_i32, %c0_i32_1 : i32
    %c0_i32_6 = arith.constant 0 : i32
    %c0_i32_7 = arith.constant 0 : i32
    %c0_i32_8 = arith.constant 0 : i32
    %6 = tpu.memref_slice %arg1[%c0_i32, %c0_i32_6, %c0_i32_7, %c0_i32_8] : memref<1x9x8x8xf32, #tpu.memory_space<vmem>> -> memref<1x9x8x8xf32, #tpu.memory_space<vmem>>
    %7 = tpu.memref_squeeze %6 : memref<1x9x8x8xf32, #tpu.memory_space<vmem>> -> memref<9x8x8xf32, #tpu.memory_space<vmem>>
    %8 = arith.index_cast %5 : i32 to index
    %c0_9 = arith.constant 0 : index
    %c0_10 = arith.constant 0 : index
    %9 = vector.load %7[%8, %c0_9, %c0_10] : memref<9x8x8xf32, #tpu.memory_space<vmem>>, vector<1x8x8xf32>
    %10 = vector.shape_cast %9 : vector<1x8x8xf32> to vector<8x8xf32>
    %11 = tpu.transpose %10, [1, 0] : vector<8x8xf32> -> vector<8x8xf32>
    %12 = arith.subf %4, %11 : vector<8x8xf32>
    %c0_i32_11 = arith.constant 0 : i32
    %c0_i32_12 = arith.constant 0 : i32
    %c0_i32_13 = arith.constant 0 : i32
    %13 = tpu.memref_slice %arg2[%c0_i32_0, %c0_i32_11, %c0_i32_12, %c0_i32_13] : memref<1x9x8x8xf32, #tpu.memory_space<vmem>> -> memref<1x9x8x8xf32, #tpu.memory_space<vmem>>
    %14 = tpu.memref_squeeze %13 : memref<1x9x8x8xf32, #tpu.memory_space<vmem>> -> memref<9x8x8xf32, #tpu.memory_space<vmem>>
    %15 = arith.index_cast %c0_i32_1 : i32 to index
    %c0_14 = arith.constant 0 : index
    %c0_15 = arith.constant 0 : index
    %16 = vector.load %14[%15, %c0_14, %c0_15] : memref<9x8x8xf32, #tpu.memory_space<vmem>>, vector<1x8x8xf32>
    %17 = vector.shape_cast %16 : vector<1x8x8xf32> to vector<8x8xf32>
    %18 = vector.shape_cast %12 : vector<8x8xf32> to vector<1x8x8xf32>
    tpu.vector_store %14[%15, %c0_14, %c0_15], %18 {strides = array<i32>} : memref<9x8x8xf32, #tpu.memory_space<vmem>>, vector<1x8x8xf32>,
    %19 = tpu.transpose %12, [1, 0] : vector<8x8xf32> -> vector<8x8xf32>
    %cst = arith.constant 0.000000e+00 : f32
    %20 = vector.broadcast %cst : f32 to vector<8x8xf32>
    %21 = arith.subf %20, %19 : vector<8x8xf32>
    %c8_i32_16 = arith.constant 8 : i32
    %22 = arith.subi %c8_i32_16, %c0_i32_1 : i32
    %c0_i32_17 = arith.constant 0 : i32
    %c0_i32_18 = arith.constant 0 : i32
    %c0_i32_19 = arith.constant 0 : i32
    %23 = tpu.memref_slice %arg2[%c0_i32_0, %c0_i32_17, %c0_i32_18, %c0_i32_19] : memref<1x9x8x8xf32, #tpu.memory_space<vmem>> -> memref<1x9x8x8xf32, #tpu.memory_space<vmem>>
    %24 = tpu.memref_squeeze %23 : memref<1x9x8x8xf32, #tpu.memory_space<vmem>> -> memref<9x8x8xf32, #tpu.memory_space<vmem>>
    %25 = arith.index_cast %22 : i32 to index
    %c0_20 = arith.constant 0 : index
    %c0_21 = arith.constant 0 : index
    %26 = vector.load %24[%25, %c0_20, %c0_21] : memref<9x8x8xf32, #tpu.memory_space<vmem>>, vector<1x8x8xf32>
    %27 = vector.shape_cast %26 : vector<1x8x8xf32> to vector<8x8xf32>
    %28 = vector.shape_cast %21 : vector<8x8xf32> to vector<1x8x8xf32>
    tpu.vector_store %24[%25, %c0_20, %c0_21], %28 {strides = array<i32>} : memref<9x8x8xf32, #tpu.memory_space<vmem>>, vector<1x8x8xf32>,
    %c1_i32 = arith.constant 1 : i32
    %c0_i32_22 = arith.constant 0 : i32
    %c0_i32_23 = arith.constant 0 : i32
    %c0_i32_24 = arith.constant 0 : i32
    %29 = tpu.memref_slice %arg1[%c0_i32, %c0_i32_22, %c0_i32_23, %c0_i32_24] : memref<1x9x8x8xf32, #tpu.memory_space<vmem>> -> memref<1x9x8x8xf32, #tpu.memory_space<vmem>>
    %30 = tpu.memref_squeeze %29 : memref<1x9x8x8xf32, #tpu.memory_space<vmem>> -> memref<9x8x8xf32, #tpu.memory_space<vmem>>
    %31 = arith.index_cast %c1_i32 : i32 to index
    %c0_25 = arith.constant 0 : index
    %c0_26 = arith.constant 0 : index
    %32 = vector.load %30[%31, %c0_25, %c0_26] : memref<9x8x8xf32, #tpu.memory_space<vmem>>, vector<1x8x8xf32>
    %33 = vector.shape_cast %32 : vector<1x8x8xf32> to vector<8x8xf32>
    %c8_i32_27 = arith.constant 8 : i32
    %34 = arith.subi %c8_i32_27, %c1_i32 : i32
    %c0_i32_28 = arith.constant 0 : i32
    %c0_i32_29 = arith.constant 0 : i32
    %c0_i32_30 = arith.constant 0 : i32
    %35 = tpu.memref_slice %arg1[%c0_i32, %c0_i32_28, %c0_i32_29, %c0_i32_30] : memref<1x9x8x8xf32, #tpu.memory_space<vmem>> -> memref<1x9x8x8xf32, #tpu.memory_space<vmem>>
    %36 = tpu.memref_squeeze %35 : memref<1x9x8x8xf32, #tpu.memory_space<vmem>> -> memref<9x8x8xf32, #tpu.memory_space<vmem>>
    %37 = arith.index_cast %34 : i32 to index
    %c0_31 = arith.constant 0 : index
    %c0_32 = arith.constant 0 : index
    %38 = vector.load %36[%37, %c0_31, %c0_32] : memref<9x8x8xf32, #tpu.memory_space<vmem>>, vector<1x8x8xf32>
    %39 = vector.shape_cast %38 : vector<1x8x8xf32> to vector<8x8xf32>
    %40 = tpu.transpose %39, [1, 0] : vector<8x8xf32> -> vector<8x8xf32>
    %41 = arith.subf %33, %40 : vector<8x8xf32>
    %c0_i32_33 = arith.constant 0 : i32
    %c0_i32_34 = arith.constant 0 : i32
    %c0_i32_35 = arith.constant 0 : i32
    %42 = tpu.memref_slice %arg2[%c0_i32_0, %c0_i32_33, %c0_i32_34, %c0_i32_35] : memref<1x9x8x8xf32, #tpu.memory_space<vmem>> -> memref<1x9x8x8xf32, #tpu.memory_space<vmem>>
    %43 = tpu.memref_squeeze %42 : memref<1x9x8x8xf32, #tpu.memory_space<vmem>> -> memref<9x8x8xf32, #tpu.memory_space<vmem>>
    %44 = arith.index_cast %c1_i32 : i32 to index
    %c0_36 = arith.constant 0 : index
    %c0_37 = arith.constant 0 : index
    %45 = vector.load %43[%44, %c0_36, %c0_37] : memref<9x8x8xf32, #tpu.memory_space<vmem>>, vector<1x8x8xf32>
    %46 = vector.shape_cast %45 : vector<1x8x8xf32> to vector<8x8xf32>
    %47 = vector.shape_cast %41 : vector<8x8xf32> to vector<1x8x8xf32>
    tpu.vector_store %43[%44, %c0_36, %c0_37], %47 {strides = array<i32>} : memref<9x8x8xf32, #tpu.memory_space<vmem>>, vector<1x8x8xf32>,
    %48 = tpu.transpose %41, [1, 0] : vector<8x8xf32> -> vector<8x8xf32>
    %cst_38 = arith.constant 0.000000e+00 : f32
    %49 = vector.broadcast %cst_38 : f32 to vector<8x8xf32>
    %50 = arith.subf %49, %48 : vector<8x8xf32>
    %c8_i32_39 = arith.constant 8 : i32
    %51 = arith.subi %c8_i32_39, %c1_i32 : i32
    %c0_i32_40 = arith.constant 0 : i32
    %c0_i32_41 = arith.constant 0 : i32
    %c0_i32_42 = arith.constant 0 : i32
    %52 = tpu.memref_slice %arg2[%c0_i32_0, %c0_i32_40, %c0_i32_41, %c0_i32_42] : memref<1x9x8x8xf32, #tpu.memory_space<vmem>> -> memref<1x9x8x8xf32, #tpu.memory_space<vmem>>
    %53 = tpu.memref_squeeze %52 : memref<1x9x8x8xf32, #tpu.memory_space<vmem>> -> memref<9x8x8xf32, #tpu.memory_space<vmem>>
    %54 = arith.index_cast %51 : i32 to index
    %c0_43 = arith.constant 0 : index
    %c0_44 = arith.constant 0 : index
    %55 = vector.load %53[%54, %c0_43, %c0_44] : memref<9x8x8xf32, #tpu.memory_space<vmem>>, vector<1x8x8xf32>
    %56 = vector.shape_cast %55 : vector<1x8x8xf32> to vector<8x8xf32>
    %57 = vector.shape_cast %50 : vector<8x8xf32> to vector<1x8x8xf32>
    tpu.vector_store %53[%54, %c0_43, %c0_44], %57 {strides = array<i32>} : memref<9x8x8xf32, #tpu.memory_space<vmem>>, vector<1x8x8xf32>,
    %c2_i32 = arith.constant 2 : i32
    %c0_i32_45 = arith.constant 0 : i32
    %c0_i32_46 = arith.constant 0 : i32
    %c0_i32_47 = arith.constant 0 : i32
    %58 = tpu.memref_slice %arg1[%c0_i32, %c0_i32_45, %c0_i32_46, %c0_i32_47] : memref<1x9x8x8xf32, #tpu.memory_space<vmem>> -> memref<1x9x8x8xf32, #tpu.memory_space<vmem>>
    %59 = tpu.memref_squeeze %58 : memref<1x9x8x8xf32, #tpu.memory_space<vmem>> -> memref<9x8x8xf32, #tpu.memory_space<vmem>>
    %60 = arith.index_cast %c2_i32 : i32 to index
    %c0_48 = arith.constant 0 : index
    %c0_49 = arith.constant 0 : index
    %61 = vector.load %59[%60, %c0_48, %c0_49] : memref<9x8x8xf32, #tpu.memory_space<vmem>>, vector<1x8x8xf32>
    %62 = vector.shape_cast %61 : vector<1x8x8xf32> to vector<8x8xf32>
    %c8_i32_50 = arith.constant 8 : i32
    %63 = arith.subi %c8_i32_50, %c2_i32 : i32
    %c0_i32_51 = arith.constant 0 : i32
    %c0_i32_52 = arith.constant 0 : i32
    %c0_i32_53 = arith.constant 0 : i32
    %64 = tpu.memref_slice %arg1[%c0_i32, %c0_i32_51, %c0_i32_52, %c0_i32_53] : memref<1x9x8x8xf32, #tpu.memory_space<vmem>> -> memref<1x9x8x8xf32, #tpu.memory_space<vmem>>
    %65 = tpu.memref_squeeze %64 : memref<1x9x8x8xf32, #tpu.memory_space<vmem>> -> memref<9x8x8xf32, #tpu.memory_space<vmem>>
    %66 = arith.index_cast %63 : i32 to index
    %c0_54 = arith.constant 0 : index
    %c0_55 = arith.constant 0 : index
    %67 = vector.load %65[%66, %c0_54, %c0_55] : memref<9x8x8xf32, #tpu.memory_space<vmem>>, vector<1x8x8xf32>
    %68 = vector.shape_cast %67 : vector<1x8x8xf32> to vector<8x8xf32>
    %69 = tpu.transpose %68, [1, 0] : vector<8x8xf32> -> vector<8x8xf32>
    %70 = arith.subf %62, %69 : vector<8x8xf32>
    %c0_i32_56 = arith.constant 0 : i32
    %c0_i32_57 = arith.constant 0 : i32
    %c0_i32_58 = arith.constant 0 : i32
    %71 = tpu.memref_slice %arg2[%c0_i32_0, %c0_i32_56, %c0_i32_57, %c0_i32_58] : memref<1x9x8x8xf32, #tpu.memory_space<vmem>> -> memref<1x9x8x8xf32, #tpu.memory_space<vmem>>
    %72 = tpu.memref_squeeze %71 : memref<1x9x8x8xf32, #tpu.memory_space<vmem>> -> memref<9x8x8xf32, #tpu.memory_space<vmem>>
    %73 = arith.index_cast %c2_i32 : i32 to index
    %c0_59 = arith.constant 0 : index
    %c0_60 = arith.constant 0 : index
    %74 = vector.load %72[%73, %c0_59, %c0_60] : memref<9x8x8xf32, #tpu.memory_space<vmem>>, vector<1x8x8xf32>
    %75 = vector.shape_cast %74 : vector<1x8x8xf32> to vector<8x8xf32>
    %76 = vector.shape_cast %70 : vector<8x8xf32> to vector<1x8x8xf32>
    tpu.vector_store %72[%73, %c0_59, %c0_60], %76 {strides = array<i32>} : memref<9x8x8xf32, #tpu.memory_space<vmem>>, vector<1x8x8xf32>,
    %77 = tpu.transpose %70, [1, 0] : vector<8x8xf32> -> vector<8x8xf32>
    %cst_61 = arith.constant 0.000000e+00 : f32
    %78 = vector.broadcast %cst_61 : f32 to vector<8x8xf32>
    %79 = arith.subf %78, %77 : vector<8x8xf32>
    %c8_i32_62 = arith.constant 8 : i32
    %80 = arith.subi %c8_i32_62, %c2_i32 : i32
    %c0_i32_63 = arith.constant 0 : i32
    %c0_i32_64 = arith.constant 0 : i32
    %c0_i32_65 = arith.constant 0 : i32
    %81 = tpu.memref_slice %arg2[%c0_i32_0, %c0_i32_63, %c0_i32_64, %c0_i32_65] : memref<1x9x8x8xf32, #tpu.memory_space<vmem>> -> memref<1x9x8x8xf32, #tpu.memory_space<vmem>>
    %82 = tpu.memref_squeeze %81 : memref<1x9x8x8xf32, #tpu.memory_space<vmem>> -> memref<9x8x8xf32, #tpu.memory_space<vmem>>
    %83 = arith.index_cast %80 : i32 to index
    %c0_66 = arith.constant 0 : index
    %c0_67 = arith.constant 0 : index
    %84 = vector.load %82[%83, %c0_66, %c0_67] : memref<9x8x8xf32, #tpu.memory_space<vmem>>, vector<1x8x8xf32>
    %85 = vector.shape_cast %84 : vector<1x8x8xf32> to vector<8x8xf32>
    %86 = vector.shape_cast %79 : vector<8x8xf32> to vector<1x8x8xf32>
    tpu.vector_store %82[%83, %c0_66, %c0_67], %86 {strides = array<i32>} : memref<9x8x8xf32, #tpu.memory_space<vmem>>, vector<1x8x8xf32>,
    %c3_i32 = arith.constant 3 : i32
    %c0_i32_68 = arith.constant 0 : i32
    %c0_i32_69 = arith.constant 0 : i32
    %c0_i32_70 = arith.constant 0 : i32
    %87 = tpu.memref_slice %arg1[%c0_i32, %c0_i32_68, %c0_i32_69, %c0_i32_70] : memref<1x9x8x8xf32, #tpu.memory_space<vmem>> -> memref<1x9x8x8xf32, #tpu.memory_space<vmem>>
    %88 = tpu.memref_squeeze %87 : memref<1x9x8x8xf32, #tpu.memory_space<vmem>> -> memref<9x8x8xf32, #tpu.memory_space<vmem>>
    %89 = arith.index_cast %c3_i32 : i32 to index
    %c0_71 = arith.constant 0 : index
    %c0_72 = arith.constant 0 : index
    %90 = vector.load %88[%89, %c0_71, %c0_72] : memref<9x8x8xf32, #tpu.memory_space<vmem>>, vector<1x8x8xf32>
    %91 = vector.shape_cast %90 : vector<1x8x8xf32> to vector<8x8xf32>
    %c8_i32_73 = arith.constant 8 : i32
    %92 = arith.subi %c8_i32_73, %c3_i32 : i32
    %c0_i32_74 = arith.constant 0 : i32
    %c0_i32_75 = arith.constant 0 : i32
    %c0_i32_76 = arith.constant 0 : i32
    %93 = tpu.memref_slice %arg1[%c0_i32, %c0_i32_74, %c0_i32_75, %c0_i32_76] : memref<1x9x8x8xf32, #tpu.memory_space<vmem>> -> memref<1x9x8x8xf32, #tpu.memory_space<vmem>>
    %94 = tpu.memref_squeeze %93 : memref<1x9x8x8xf32, #tpu.memory_space<vmem>> -> memref<9x8x8xf32, #tpu.memory_space<vmem>>
    %95 = arith.index_cast %92 : i32 to index
    %c0_77 = arith.constant 0 : index
    %c0_78 = arith.constant 0 : index
    %96 = vector.load %94[%95, %c0_77, %c0_78] : memref<9x8x8xf32, #tpu.memory_space<vmem>>, vector<1x8x8xf32>
    %97 = vector.shape_cast %96 : vector<1x8x8xf32> to vector<8x8xf32>
    %98 = tpu.transpose %97, [1, 0] : vector<8x8xf32> -> vector<8x8xf32>
    %99 = arith.subf %91, %98 : vector<8x8xf32>
    %c0_i32_79 = arith.constant 0 : i32
    %c0_i32_80 = arith.constant 0 : i32
    %c0_i32_81 = arith.constant 0 : i32
    %100 = tpu.memref_slice %arg2[%c0_i32_0, %c0_i32_79, %c0_i32_80, %c0_i32_81] : memref<1x9x8x8xf32, #tpu.memory_space<vmem>> -> memref<1x9x8x8xf32, #tpu.memory_space<vmem>>
    %101 = tpu.memref_squeeze %100 : memref<1x9x8x8xf32, #tpu.memory_space<vmem>> -> memref<9x8x8xf32, #tpu.memory_space<vmem>>
    %102 = arith.index_cast %c3_i32 : i32 to index
    %c0_82 = arith.constant 0 : index
    %c0_83 = arith.constant 0 : index
    %103 = vector.load %101[%102, %c0_82, %c0_83] : memref<9x8x8xf32, #tpu.memory_space<vmem>>, vector<1x8x8xf32>
    %104 = vector.shape_cast %103 : vector<1x8x8xf32> to vector<8x8xf32>
    %105 = vector.shape_cast %99 : vector<8x8xf32> to vector<1x8x8xf32>
    tpu.vector_store %101[%102, %c0_82, %c0_83], %105 {strides = array<i32>} : memref<9x8x8xf32, #tpu.memory_space<vmem>>, vector<1x8x8xf32>,
    %106 = tpu.transpose %99, [1, 0] : vector<8x8xf32> -> vector<8x8xf32>
    %cst_84 = arith.constant 0.000000e+00 : f32
    %107 = vector.broadcast %cst_84 : f32 to vector<8x8xf32>
    %108 = arith.subf %107, %106 : vector<8x8xf32>
    %c8_i32_85 = arith.constant 8 : i32
    %109 = arith.subi %c8_i32_85, %c3_i32 : i32
    %c0_i32_86 = arith.constant 0 : i32
    %c0_i32_87 = arith.constant 0 : i32
    %c0_i32_88 = arith.constant 0 : i32
    %110 = tpu.memref_slice %arg2[%c0_i32_0, %c0_i32_86, %c0_i32_87, %c0_i32_88] : memref<1x9x8x8xf32, #tpu.memory_space<vmem>> -> memref<1x9x8x8xf32, #tpu.memory_space<vmem>>
    %111 = tpu.memref_squeeze %110 : memref<1x9x8x8xf32, #tpu.memory_space<vmem>> -> memref<9x8x8xf32, #tpu.memory_space<vmem>>
    %112 = arith.index_cast %109 : i32 to index
    %c0_89 = arith.constant 0 : index
    %c0_90 = arith.constant 0 : index
    %113 = vector.load %111[%112, %c0_89, %c0_90] : memref<9x8x8xf32, #tpu.memory_space<vmem>>, vector<1x8x8xf32>
    %114 = vector.shape_cast %113 : vector<1x8x8xf32> to vector<8x8xf32>
    %115 = vector.shape_cast %108 : vector<8x8xf32> to vector<1x8x8xf32>
    tpu.vector_store %111[%112, %c0_89, %c0_90], %115 {strides = array<i32>} : memref<9x8x8xf32, #tpu.memory_space<vmem>>, vector<1x8x8xf32>,
    %c4_i32 = arith.constant 4 : i32
    %c0_i32_91 = arith.constant 0 : i32
    %c0_i32_92 = arith.constant 0 : i32
    %c0_i32_93 = arith.constant 0 : i32
    %c0_i32_94 = arith.constant 0 : i32
    %116 = tpu.memref_slice %arg1[%c0_i32_91, %c0_i32_92, %c0_i32_93, %c0_i32_94] : memref<1x9x8x8xf32, #tpu.memory_space<vmem>> -> memref<1x9x8x8xf32, #tpu.memory_space<vmem>>
    %117 = tpu.memref_squeeze %116 : memref<1x9x8x8xf32, #tpu.memory_space<vmem>> -> memref<9x8x8xf32, #tpu.memory_space<vmem>>
    %c4 = arith.constant 4 : index
    %c0_95 = arith.constant 0 : index
    %c0_96 = arith.constant 0 : index
    %118 = vector.load %117[%c4, %c0_95, %c0_96] : memref<9x8x8xf32, #tpu.memory_space<vmem>>, vector<1x8x8xf32>
    %119 = vector.shape_cast %118 : vector<1x8x8xf32> to vector<8x8xf32>
    %120 = tpu.transpose %119, [1, 0] : vector<8x8xf32> -> vector<8x8xf32>
    %121 = arith.subf %119, %120 : vector<8x8xf32>
    %c0_i32_97 = arith.constant 0 : i32
    %c0_i32_98 = arith.constant 0 : i32
    %c0_i32_99 = arith.constant 0 : i32
    %c0_i32_100 = arith.constant 0 : i32
    %122 = tpu.memref_slice %arg2[%c0_i32_97, %c0_i32_98, %c0_i32_99, %c0_i32_100] : memref<1x9x8x8xf32, #tpu.memory_space<vmem>> -> memref<1x9x8x8xf32, #tpu.memory_space<vmem>>
    %123 = tpu.memref_squeeze %122 : memref<1x9x8x8xf32, #tpu.memory_space<vmem>> -> memref<9x8x8xf32, #tpu.memory_space<vmem>>
    %c4_101 = arith.constant 4 : index
    %c0_102 = arith.constant 0 : index
    %c0_103 = arith.constant 0 : index
    %124 = vector.load %123[%c4_101, %c0_102, %c0_103] : memref<9x8x8xf32, #tpu.memory_space<vmem>>, vector<1x8x8xf32>
    %125 = vector.shape_cast %124 : vector<1x8x8xf32> to vector<8x8xf32>
    %126 = vector.shape_cast %121 : vector<8x8xf32> to vector<1x8x8xf32>
    tpu.vector_store %123[%c4_101, %c0_102, %c0_103], %126 {strides = array<i32>} : memref<9x8x8xf32, #tpu.memory_space<vmem>>, vector<1x8x8xf32>,
    return
  }
  func.func @transform_0(%arg0: i32) -> (i32, i32, i32, i32) {
    %c0_i32 = arith.constant 0 : i32
    %c0_i32_0 = arith.constant 0 : i32
    %c0_i32_1 = arith.constant 0 : i32
    %c0_i32_2 = arith.constant 0 : i32
    return %arg0, %c0_i32, %c0_i32_0, %c0_i32_1 : i32, i32, i32, i32
  }
  func.func @transform_1(%arg0: i32) -> (i32, i32, i32, i32) {
    %c0_i32 = arith.constant 0 : i32
    %c0_i32_0 = arith.constant 0 : i32
    %c0_i32_1 = arith.constant 0 : i32
    %c0_i32_2 = arith.constant 0 : i32
    return %arg0, %c0_i32, %c0_i32_0, %c0_i32_1 : i32, i32, i32, i32
  }
}

</mosaic_0001>

<llo_original>
// kernel: skew.1
$region0: #{skew.1}
  #allocation0 [shape = 'u32[]', space=smem, size = 0x4, offset = 0x4, fixed_abs, tag = 'smem constant byte address 0x4 - core index']
  #allocation1 [shape = 'u32[144,128]{1,0:T(1,128)}', space=vmem, size = 0x12000, scoped, tag = 'internal scratch']
  %s0 = inlined_call_operand.vmem [shape: f32[2,9,8,8], index: 0, kind: input, shape index: {}]
  %s1 = inlined_call_operand.vmem [shape: f32[2,9,8,8], index: 1, kind: output, shape index: {}]
  %s2 = sld [smem:[#allocation0]]
  $region37: #{skew.1} parent=0
    _
  %s4 = ssub.s32 1, %s2
  %s5 = scalar_select 0, %s4, %s2
  loop: start=0, step=1, limit=4
  $region2: #{skew.1} parent=0 // loop_pre_header
    _
  $region3: #{skew.1} parent=0 // loop_header
    %s7 = sphi 0, %s11
    %p8 = scmp.ge.s32.totalorder %s7, 4
    %s17 = sphi 0, %s19
    %s20 = sphi 0, %s17
    %s21 = sphi 0, %s20
    %s37 = sphi 0, %s21
    %s43 = sphi 0, %s45
    %s46 = sphi 0, %s43
    %s47 = sphi 0, %s46
    %s63 = sphi 0, %s47
  $region4: #{skew.1} parent=0 // loop_header_branch
    %10 = sbr.rel (%p8) target = $region8
  $region5: #{skew.1} parent=0 // loop_body
    %s12 = ssub.s32 %s7, 1
    %s13 = ssub.s32 %s7, 2
    %s14 = sadd.s32 %s7, 1
    %s15 = ssub.s32 %s7, %s14
    %p16 = scmp.eq.s32.totalorder %s15, 0
    %s18 = sadd.s32 %s17, 1
    %s19 = scalar_select %p16, %s17, %s18
    %p22 = pneg %p16
    %p23 = scmp.eq.s32.totalorder %s7, 1
    %p24 = por %p22, %p23
    %p25 = scmp.ne.s32.totalorder %s17, %s20
    %p26 = scmp.eq.s32.totalorder %s7, 0
    %p27 = por %p25, %p26
    %p28 = scmp.ne.s32.totalorder %s17, %s20
    %p29 = scmp.eq.s32.totalorder %s12, 1
    %p30 = por %p28, %p29
    %p31 = scmp.ne.s32.totalorder %s20, %s21
    %p32 = scmp.eq.s32.totalorder %s12, 0
    %p33 = por %p31, %p32
    %p34 = scmp.ne.s32.totalorder %s20, %s21
    %p35 = scmp.eq.s32.totalorder %s13, 1
    %p36 = por %p34, %p35
    %p38 = scmp.ne.s32.totalorder %s21, %s37
    %p39 = scmp.eq.s32.totalorder %s13, 0
    %p40 = por %p38, %p39
    %s41 = ssub.s32 %s7, %s14
    %p42 = scmp.eq.s32.totalorder %s41, 0
    %s44 = sadd.s32 %s43, 1
    %s45 = scalar_select %p42, %s43, %s44
    %p48 = pneg %p42
    %p49 = scmp.eq.s32.totalorder %s7, 1
    %p50 = por %p48, %p49
    %p51 = scmp.ne.s32.totalorder %s43, %s46
    %p52 = scmp.eq.s32.totalorder %s7, 0
    %p53 = por %p51, %p52
    %p54 = scmp.ne.s32.totalorder %s43, %s46
    %p55 = scmp.eq.s32.totalorder %s12, 1
    %p56 = por %p54, %p55
    %p57 = scmp.ne.s32.totalorder %s46, %s47
    %p58 = scmp.eq.s32.totalorder %s12, 0
    %p59 = por %p57, %p58
    %p60 = scmp.ne.s32.totalorder %s46, %s47
    %p61 = scmp.eq.s32.totalorder %s13, 1
    %p62 = por %p60, %p61
    %p64 = scmp.ne.s32.totalorder %s47, %s63
    %p65 = scmp.eq.s32.totalorder %s13, 0
    %p66 = por %p64, %p65
    %p67 = scmp.le.s32.totalorder 1, %s7
    %p68 = scmp.lt.s32.totalorder %s7, 3
    %p69 = pnand %p67, %p68
    %p70 = pneg %p69
    // Predicated region
    $region9: #{skew.1} parent=5 // pred_check
      _
    $region10: #{skew.1} parent=5 // pred_check_branch
      %72 = sbr.rel (%p69) target = $region12
    $region11: #{skew.1} parent=5 // pred_region
      %s73 = ssub.s32 %s7, 1
    $region12: #{skew.1} parent=5 // pred_fallthru
      _
    %p74 = scmp.lt.s32.totalorder %s7, 2
    // Predicated region
    $region13: #{skew.1} parent=5 // pred_check
      %p75 = pneg %p74
    $region14: #{skew.1} parent=5 // pred_check_branch
      %77 = sbr.rel (%p75) target = $region16
    $region15: #{skew.1} parent=5 // pred_region
      // Predicated region
      $region17: #{skew.1} parent=15 // pred_check
        %p78 = pneg %p27
      $region18: #{skew.1} parent=15 // pred_check_branch
        %80 = sbr.rel (%p78) target = $region20
      $region19: #{skew.1} parent=15 // pred_region
        %p81 = scmp.lt.s32.totalorder %s7, 1
        %s82 = scalar_select %p81, %s7, 1
        %s83 = smul.addr %s82, 9
        %s84 = smul.addr %s83, 8
        %s85 = scalar_lea.vmem %s0, %s84
      $region20: #{skew.1} parent=15 // pred_fallthru
        _
    $region16: #{skew.1} parent=5 // pred_fallthru
      _
    %p86 = scmp.le.s32.totalorder 1, %s7
    %p87 = scmp.lt.s32.totalorder %s7, 3
    %p88 = pnand %p86, %p87
    %p89 = pneg %p88
    // Predicated region
    $region21: #{skew.1} parent=5 // pred_check
      _
    $region22: #{skew.1} parent=5 // pred_check_branch
      %91 = sbr.rel (%p88) target = $region24
    $region23: #{skew.1} parent=5 // pred_region
      %s92 = ssub.s32 %s7, 1
      %p93 = scmp.lt.s32.totalorder %s12, 1
      %s94 = scalar_select %p93, %s12, 1
      %s95 = smul.addr %s94, 9
      %s96 = smul.addr %s95, 8
      %s97 = scalar_lea.vmem %s0, %s96
      %p98 = pneg %p33
      %p99 = pneg %p30
      %p100 = pneg %p59
      %p101 = pneg %p56
      %p102 = scmp.lt.s32.totalorder %s12, 1
      %s103 = scalar_select %p102, %s12, 1
      %s104 = smul.addr %s103, 9
      %s105 = smul.addr %s104, 8
      %s106 = scalar_lea.vmem %s1, %s105
      %p107 = scmp.lt.s32.totalorder %s12, 1
      %s108 = scalar_select %p107, %s12, 1
      %s109 = smul.addr %s108, 9
      %s110 = smul.addr %s109, 8
      %s111 = scalar_lea.vmem %s0, %s110
      %p112 = scmp.lt.s32.totalorder %s12, 1
      %s113 = scalar_select %p112, %s12, 1
      %s114 = smul.addr %s113, 9
      %s115 = smul.addr %s114, 8
      %s116 = scalar_lea.vmem %s1, %s115
      %v117 = vld [vmem:[%s111] sm:$0xff]
      %s118 = scalar_lea.vmem %s111, 64
      %v119 = vld [vmem:[%s118] sm:$0xff]
      %120 = vxpose.xlu0.b32.start [1/16] %v119, 128
      %121 = vxpose.xlu0.b32.cont [2/16] 0.0, 128
      %122 = vxpose.xlu0.b32.cont [3/16] 0.0, 128
      %123 = vxpose.xlu0.b32.cont [4/16] 0.0, 128
      %124 = vxpose.xlu0.b32.cont [5/16] 0.0, 128
      %125 = vxpose.xlu0.b32.cont [6/16] 0.0, 128
      %126 = vxpose.xlu0.b32.cont [7/16] 0.0, 128
      %127 = vxpose.xlu0.b32.cont [8/16] 0.0, 128
      %128 = vxpose.xlu0.b32.cont [9/16] 0.0, 128
      %129 = vxpose.xlu0.b32.cont [10/16] 0.0, 128
      %130 = vxpose.xlu0.b32.cont [11/16] 0.0, 128
      %131 = vxpose.xlu0.b32.cont [12/16] 0.0, 128
      %132 = vxpose.xlu0.b32.cont [13/16] 0.0, 128
      %133 = vxpose.xlu0.b32.cont [14/16] 0.0, 128
      %134 = vxpose.xlu0.b32.cont [15/16] 0.0, 128
      %135 = vxpose.xlu0.b32.end [16/16] 0.0, 128
      %v136 = vpop.trf.xlu0
      %v137 = vpop.trf.xlu0
      %v138 = vpop.trf.xlu0
      %v139 = vpop.trf.xlu0
      %v140 = vpop.trf.xlu0
      %v141 = vpop.trf.xlu0
      %v142 = vpop.trf.xlu0
      %v143 = vpop.trf.xlu0
      %v144 = vpop.trf.xlu0
      %v145 = vpop.trf.xlu0
      %v146 = vpop.trf.xlu0
      %v147 = vpop.trf.xlu0
      %v148 = vpop.trf.xlu0
      %v149 = vpop.trf.xlu0
      %v150 = vpop.trf.xlu0
      %v151 = vpop.trf.xlu0
      %v152 = vsub.f32 %v117, %v136
      %vm153 = vcmask 64512
      %154 = vst.msk [vmem:[%s116] sm:$0xff] %vm153, %v152
      %155 = vxpose.xlu0.b32.start [1/16] %v152, 128
      %156 = vxpose.xlu0.b32.cont [2/16] 0.0, 128
      %157 = vxpose.xlu0.b32.cont [3/16] 0.0, 128
      %158 = vxpose.xlu0.b32.cont [4/16] 0.0, 128
      %159 = vxpose.xlu0.b32.cont [5/16] 0.0, 128
      %160 = vxpose.xlu0.b32.cont [6/16] 0.0, 128
      %161 = vxpose.xlu0.b32.cont [7/16] 0.0, 128
      %162 = vxpose.xlu0.b32.cont [8/16] 0.0, 128
      %163 = vxpose.xlu0.b32.cont [9/16] 0.0, 128
      %164 = vxpose.xlu0.b32.cont [10/16] 0.0, 128
      %165 = vxpose.xlu0.b32.cont [11/16] 0.0, 128
      %166 = vxpose.xlu0.b32.cont [12/16] 0.0, 128
      %167 = vxpose.xlu0.b32.cont [13/16] 0.0, 128
      %168 = vxpose.xlu0.b32.cont [14/16] 0.0, 128
      %169 = vxpose.xlu0.b32.cont [15/16] 0.0, 128
      %170 = vxpose.xlu0.b32.end [16/16] 0.0, 128
      %v171 = vpop.trf.xlu0
      %v172 = vpop.trf.xlu0
      %v173 = vpop.trf.xlu0
      %v174 = vpop.trf.xlu0
      %v175 = vpop.trf.xlu0
      %v176 = vpop.trf.xlu0
      %v177 = vpop.trf.xlu0
      %v178 = vpop.trf.xlu0
      %v179 = vpop.trf.xlu0
      %v180 = vpop.trf.xlu0
      %v181 = vpop.trf.xlu0
      %v182 = vpop.trf.xlu0
      %v183 = vpop.trf.xlu0
      %v184 = vpop.trf.xlu0
      %v185 = vpop.trf.xlu0
      %v186 = vpop.trf.xlu0
      %v187 = vsub.f32 0.0, %v171
      %s188 = scalar_lea.vmem %s116, 64
      %189 = vst.msk [vmem:[%s188] sm:$0xff] %vm153, %v187
      %s190 = scalar_lea.vmem %s111, 8
      %v191 = vld [vmem:[%s190] sm:$0xff]
      %s192 = scalar_lea.vmem %s111, 56
      %v193 = vld [vmem:[%s192] sm:$0xff]
      %194 = vxpose.xlu0.b32.start [1/16] %v193, 128
      %195 = vxpose.xlu0.b32.cont [2/16] 0.0, 128
      %196 = vxpose.xlu0.b32.cont [3/16] 0.0, 128
      %197 = vxpose.xlu0.b32.cont [4/16] 0.0, 128
      %198 = vxpose.xlu0.b32.cont [5/16] 0.0, 128
      %199 = vxpose.xlu0.b32.cont [6/16] 0.0, 128
      %200 = vxpose.xlu0.b32.cont [7/16] 0.0, 128
      %201 = vxpose.xlu0.b32.cont [8/16] 0.0, 128
      %202 = vxpose.xlu0.b32.cont [9/16] 0.0, 128
      %203 = vxpose.xlu0.b32.cont [10/16] 0.0, 128
      %204 = vxpose.xlu0.b32.cont [11/16] 0.0, 128
      %205 = vxpose.xlu0.b32.cont [12/16] 0.0, 128
      %206 = vxpose.xlu0.b32.cont [13/16] 0.0, 128
      %207 = vxpose.xlu0.b32.cont [14/16] 0.0, 128
      %208 = vxpose.xlu0.b32.cont [15/16] 0.0, 128
      %209 = vxpose.xlu0.b32.end [16/16] 0.0, 128
      %v210 = vpop.trf.xlu0
      %v211 = vpop.trf.xlu0
      %v212 = vpop.trf.xlu0
      %v213 = vpop.trf.xlu0
      %v214 = vpop.trf.xlu0
      %v215 = vpop.trf.xlu0
      %v216 = vpop.trf.xlu0
      %v217 = vpop.trf.xlu0
      %v218 = vpop.trf.xlu0
      %v219 = vpop.trf.xlu0
      %v220 = vpop.trf.xlu0
      %v221 = vpop.trf.xlu0
      %v222 = vpop.trf.xlu0
      %v223 = vpop.trf.xlu0
      %v224 = vpop.trf.xlu0
      %v225 = vpop.trf.xlu0
      %v226 = vsub.f32 %v191, %v210
      %s227 = scalar_lea.vmem %s116, 8
      %228 = vst.msk [vmem:[%s227] sm:$0xff] %vm153, %v226
      %229 = vxpose.xlu0.b32.start [1/16] %v226, 128
      %230 = vxpose.xlu0.b32.cont [2/16] 0.0, 128
      %231 = vxpose.xlu0.b32.cont [3/16] 0.0, 128
      %232 = vxpose.xlu0.b32.cont [4/16] 0.0, 128
      %233 = vxpose.xlu0.b32.cont [5/16] 0.0, 128
      %234 = vxpose.xlu0.b32.cont [6/16] 0.0, 128
      %235 = vxpose.xlu0.b32.cont [7/16] 0.0, 128
      %236 = vxpose.xlu0.b32.cont [8/16] 0.0, 128
      %237 = vxpose.xlu0.b32.cont [9/16] 0.0, 128
      %238 = vxpose.xlu0.b32.cont [10/16] 0.0, 128
      %239 = vxpose.xlu0.b32.cont [11/16] 0.0, 128
      %240 = vxpose.xlu0.b32.cont [12/16] 0.0, 128
      %241 = vxpose.xlu0.b32.cont [13/16] 0.0, 128
      %242 = vxpose.xlu0.b32.cont [14/16] 0.0, 128
      %243 = vxpose.xlu0.b32.cont [15/16] 0.0, 128
      %244 = vxpose.xlu0.b32.end [16/16] 0.0, 128
      %v245 = vpop.trf.xlu0
      %v246 = vpop.trf.xlu0
      %v247 = vpop.trf.xlu0
      %v248 = vpop.trf.xlu0
      %v249 = vpop.trf.xlu0
      %v250 = vpop.trf.xlu0
      %v251 = vpop.trf.xlu0
      %v252 = vpop.trf.xlu0
      %v253 = vpop.trf.xlu0
      %v254 = vpop.trf.xlu0
      %v255 = vpop.trf.xlu0
      %v256 = vpop.trf.xlu0
      %v257 = vpop.trf.xlu0
      %v258 = vpop.trf.xlu0
      %v259 = vpop.trf.xlu0
      %v260 = vpop.trf.xlu0
      %v261 = vsub.f32 0.0, %v245
      %s262 = scalar_lea.vmem %s116, 56
      %263 = vst.msk [vmem:[%s262] sm:$0xff] %vm153, %v261
      %s264 = scalar_lea.vmem %s111, 16
      %v265 = vld [vmem:[%s264] sm:$0xff]
      %s266 = scalar_lea.vmem %s111, 48
      %v267 = vld [vmem:[%s266] sm:$0xff]
      %268 = vxpose.xlu0.b32.start [1/16] %v267, 128
      %269 = vxpose.xlu0.b32.cont [2/16] 0.0, 128
      %270 = vxpose.xlu0.b32.cont [3/16] 0.0, 128
      %271 = vxpose.xlu0.b32.cont [4/16] 0.0, 128
      %272 = vxpose.xlu0.b32.cont [5/16] 0.0, 128
      %273 = vxpose.xlu0.b32.cont [6/16] 0.0, 128
      %274 = vxpose.xlu0.b32.cont [7/16] 0.0, 128
      %275 = vxpose.xlu0.b32.cont [8/16] 0.0, 128
      %276 = vxpose.xlu0.b32.cont [9/16] 0.0, 128
      %277 = vxpose.xlu0.b32.cont [10/16] 0.0, 128
      %278 = vxpose.xlu0.b32.cont [11/16] 0.0, 128
      %279 = vxpose.xlu0.b32.cont [12/16] 0.0, 128
      %280 = vxpose.xlu0.b32.cont [13/16] 0.0, 128
      %281 = vxpose.xlu0.b32.cont [14/16] 0.0, 128
      %282 = vxpose.xlu0.b32.cont [15/16] 0.0, 128
      %283 = vxpose.xlu0.b32.end [16/16] 0.0, 128
      %v284 = vpop.trf.xlu0
      %v285 = vpop.trf.xlu0
      %v286 = vpop.trf.xlu0
      %v287 = vpop.trf.xlu0
      %v288 = vpop.trf.xlu0
      %v289 = vpop.trf.xlu0
      %v290 = vpop.trf.xlu0
      %v291 = vpop.trf.xlu0
      %v292 = vpop.trf.xlu0
      %v293 = vpop.trf.xlu0
      %v294 = vpop.trf.xlu0
      %v295 = vpop.trf.xlu0
      %v296 = vpop.trf.xlu0
      %v297 = vpop.trf.xlu0
      %v298 = vpop.trf.xlu0
      %v299 = vpop.trf.xlu0
      %v300 = vsub.f32 %v265, %v284
      %s301 = scalar_lea.vmem %s116, 16
      %302 = vst.msk [vmem:[%s301] sm:$0xff] %vm153, %v300
      %303 = vxpose.xlu0.b32.start [1/16] %v300, 128
      %304 = vxpose.xlu0.b32.cont [2/16] 0.0, 128
      %305 = vxpose.xlu0.b32.cont [3/16] 0.0, 128
      %306 = vxpose.xlu0.b32.cont [4/16] 0.0, 128
      %307 = vxpose.xlu0.b32.cont [5/16] 0.0, 128
      %308 = vxpose.xlu0.b32.cont [6/16] 0.0, 128
      %309 = vxpose.xlu0.b32.cont [7/16] 0.0, 128
      %310 = vxpose.xlu0.b32.cont [8/16] 0.0, 128
      %311 = vxpose.xlu0.b32.cont [9/16] 0.0, 128
      %312 = vxpose.xlu0.b32.cont [10/16] 0.0, 128
      %313 = vxpose.xlu0.b32.cont [11/16] 0.0, 128
      %314 = vxpose.xlu0.b32.cont [12/16] 0.0, 128
      %315 = vxpose.xlu0.b32.cont [13/16] 0.0, 128
      %316 = vxpose.xlu0.b32.cont [14/16] 0.0, 128
      %317 = vxpose.xlu0.b32.cont [15/16] 0.0, 128
      %318 = vxpose.xlu0.b32.end [16/16] 0.0, 128
      %v319 = vpop.trf.xlu0
      %v320 = vpop.trf.xlu0
      %v321 = vpop.trf.xlu0
      %v322 = vpop.trf.xlu0
      %v323 = vpop.trf.xlu0
      %v324 = vpop.trf.xlu0
      %v325 = vpop.trf.xlu0
      %v326 = vpop.trf.xlu0
      %v327 = vpop.trf.xlu0
      %v328 = vpop.trf.xlu0
      %v329 = vpop.trf.xlu0
      %v330 = vpop.trf.xlu0
      %v331 = vpop.trf.xlu0
      %v332 = vpop.trf.xlu0
      %v333 = vpop.trf.xlu0
      %v334 = vpop.trf.xlu0
      %v335 = vsub.f32 0.0, %v319
      %s336 = scalar_lea.vmem %s116, 48
      %337 = vst.msk [vmem:[%s336] sm:$0xff] %vm153, %v335
      %s338 = scalar_lea.vmem %s111, 24
      %v339 = vld [vmem:[%s338] sm:$0xff]
      %s340 = scalar_lea.vmem %s111, 40
      %v341 = vld [vmem:[%s340] sm:$0xff]
      %342 = vxpose.xlu0.b32.start [1/16] %v341, 128
      %343 = vxpose.xlu0.b32.cont [2/16] 0.0, 128
      %344 = vxpose.xlu0.b32.cont [3/16] 0.0, 128
      %345 = vxpose.xlu0.b32.cont [4/16] 0.0, 128
      %346 = vxpose.xlu0.b32.cont [5/16] 0.0, 128
      %347 = vxpose.xlu0.b32.cont [6/16] 0.0, 128
      %348 = vxpose.xlu0.b32.cont [7/16] 0.0, 128
      %349 = vxpose.xlu0.b32.cont [8/16] 0.0, 128
      %350 = vxpose.xlu0.b32.cont [9/16] 0.0, 128
      %351 = vxpose.xlu0.b32.cont [10/16] 0.0, 128
      %352 = vxpose.xlu0.b32.cont [11/16] 0.0, 128
      %353 = vxpose.xlu0.b32.cont [12/16] 0.0, 128
      %354 = vxpose.xlu0.b32.cont [13/16] 0.0, 128
      %355 = vxpose.xlu0.b32.cont [14/16] 0.0, 128
      %356 = vxpose.xlu0.b32.cont [15/16] 0.0, 128
      %357 = vxpose.xlu0.b32.end [16/16] 0.0, 128
      %v358 = vpop.trf.xlu0
      %v359 = vpop.trf.xlu0
      %v360 = vpop.trf.xlu0
      %v361 = vpop.trf.xlu0
      %v362 = vpop.trf.xlu0
      %v363 = vpop.trf.xlu0
      %v364 = vpop.trf.xlu0
      %v365 = vpop.trf.xlu0
      %v366 = vpop.trf.xlu0
      %v367 = vpop.trf.xlu0
      %v368 = vpop.trf.xlu0
      %v369 = vpop.trf.xlu0
      %v370 = vpop.trf.xlu0
      %v371 = vpop.trf.xlu0
      %v372 = vpop.trf.xlu0
      %v373 = vpop.trf.xlu0
      %v374 = vsub.f32 %v339, %v358
      %s375 = scalar_lea.vmem %s116, 24
      %376 = vst.msk [vmem:[%s375] sm:$0xff] %vm153, %v374
      %377 = vxpose.xlu0.b32.start [1/16] %v374, 128
      %378 = vxpose.xlu0.b32.cont [2/16] 0.0, 128
      %379 = vxpose.xlu0.b32.cont [3/16] 0.0, 128
      %380 = vxpose.xlu0.b32.cont [4/16] 0.0, 128
      %381 = vxpose.xlu0.b32.cont [5/16] 0.0, 128
      %382 = vxpose.xlu0.b32.cont [6/16] 0.0, 128
      %383 = vxpose.xlu0.b32.cont [7/16] 0.0, 128
      %384 = vxpose.xlu0.b32.cont [8/16] 0.0, 128
      %385 = vxpose.xlu0.b32.cont [9/16] 0.0, 128
      %386 = vxpose.xlu0.b32.cont [10/16] 0.0, 128
      %387 = vxpose.xlu0.b32.cont [11/16] 0.0, 128
      %388 = vxpose.xlu0.b32.cont [12/16] 0.0, 128
      %389 = vxpose.xlu0.b32.cont [13/16] 0.0, 128
      %390 = vxpose.xlu0.b32.cont [14/16] 0.0, 128
      %391 = vxpose.xlu0.b32.cont [15/16] 0.0, 128
      %392 = vxpose.xlu0.b32.end [16/16] 0.0, 128
      %v393 = vpop.trf.xlu0
      %v394 = vpop.trf.xlu0
      %v395 = vpop.trf.xlu0
      %v396 = vpop.trf.xlu0
      %v397 = vpop.trf.xlu0
      %v398 = vpop.trf.xlu0
      %v399 = vpop.trf.xlu0
      %v400 = vpop.trf.xlu0
      %v401 = vpop.trf.xlu0
      %v402 = vpop.trf.xlu0
      %v403 = vpop.trf.xlu0
      %v404 = vpop.trf.xlu0
      %v405 = vpop.trf.xlu0
      %v406 = vpop.trf.xlu0
      %v407 = vpop.trf.xlu0
      %v408 = vpop.trf.xlu0
      %v409 = vsub.f32 0.0, %v393
      %s410 = scalar_lea.vmem %s116, 40
      %411 = vst.msk [vmem:[%s410] sm:$0xff] %vm153, %v409
      %s412 = scalar_lea.vmem %s111, 32
      %v413 = vld [vmem:[%s412] sm:$0xff]
      %414 = vxpose.xlu0.b32.start [1/16] %v413, 128
      %415 = vxpose.xlu0.b32.cont [2/16] 0.0, 128
      %416 = vxpose.xlu0.b32.cont [3/16] 0.0, 128
      %417 = vxpose.xlu0.b32.cont [4/16] 0.0, 128
      %418 = vxpose.xlu0.b32.cont [5/16] 0.0, 128
      %419 = vxpose.xlu0.b32.cont [6/16] 0.0, 128
      %420 = vxpose.xlu0.b32.cont [7/16] 0.0, 128
      %421 = vxpose.xlu0.b32.cont [8/16] 0.0, 128
      %422 = vxpose.xlu0.b32.cont [9/16] 0.0, 128
      %423 = vxpose.xlu0.b32.cont [10/16] 0.0, 128
      %424 = vxpose.xlu0.b32.cont [11/16] 0.0, 128
      %425 = vxpose.xlu0.b32.cont [12/16] 0.0, 128
      %426 = vxpose.xlu0.b32.cont [13/16] 0.0, 128
      %427 = vxpose.xlu0.b32.cont [14/16] 0.0, 128
      %428 = vxpose.xlu0.b32.cont [15/16] 0.0, 128
      %429 = vxpose.xlu0.b32.end [16/16] 0.0, 128
      %v430 = vpop.trf.xlu0
      %v431 = vpop.trf.xlu0
      %v432 = vpop.trf.xlu0
      %v433 = vpop.trf.xlu0
      %v434 = vpop.trf.xlu0
      %v435 = vpop.trf.xlu0
      %v436 = vpop.trf.xlu0
      %v437 = vpop.trf.xlu0
      %v438 = vpop.trf.xlu0
      %v439 = vpop.trf.xlu0
      %v440 = vpop.trf.xlu0
      %v441 = vpop.trf.xlu0
      %v442 = vpop.trf.xlu0
      %v443 = vpop.trf.xlu0
      %v444 = vpop.trf.xlu0
      %v445 = vpop.trf.xlu0
      %v446 = vsub.f32 %v413, %v430
      %s447 = scalar_lea.vmem %s116, 32
      %448 = vst.msk [vmem:[%s447] sm:$0xff] %vm153, %v446
      %p449 = scmp.lt.s32.totalorder %s12, 1
      %s450 = scalar_select %p449, %s12, 1
      %s451 = smul.addr %s450, 9
      %s452 = smul.addr %s451, 8
      %s453 = scalar_lea.vmem %s1, %s452
      // Predicated region
      $region25: #{skew.1} parent=23 // pred_check
        %p454 = pneg %p56
      $region26: #{skew.1} parent=23 // pred_check_branch
        %456 = sbr.rel (%p454) target = $region28
      $region27: #{skew.1} parent=23 // pred_region
        _
      $region28: #{skew.1} parent=23 // pred_fallthru
        _
    $region24: #{skew.1} parent=5 // pred_fallthru
      _
    %p457 = scmp.le.s32.totalorder 2, %s7
    // Predicated region
    $region29: #{skew.1} parent=5 // pred_check
      %p458 = pneg %p457
    $region30: #{skew.1} parent=5 // pred_check_branch
      %460 = sbr.rel (%p458) target = $region32
    $region31: #{skew.1} parent=5 // pred_region
      %s461 = ssub.s32 %s7, 2
      // Predicated region
      $region33: #{skew.1} parent=31 // pred_check
        %p462 = pneg %p62
      $region34: #{skew.1} parent=31 // pred_check_branch
        %464 = sbr.rel (%p462) target = $region36
      $region35: #{skew.1} parent=31 // pred_region
        %p465 = scmp.lt.s32.totalorder %s13, 1
        %s466 = scalar_select %p465, %s13, 1
        %s467 = smul.addr %s466, 9
        %s468 = smul.addr %s467, 8
        %s469 = scalar_lea.vmem %s1, %s468
      $region36: #{skew.1} parent=31 // pred_fallthru
        _
    $region32: #{skew.1} parent=5 // pred_fallthru
      _
  $region6: #{skew.1} parent=0 // loop_footer
    %s11 = sadd.s32 1, %s7
  $region7: #{skew.1} parent=0 // loop_footer_branch
    %6 = sbr.rel target = $region3
  $region8: #{skew.1} parent=0 // loop_exit
    _

</llo_original>
